<compile_context>
chip_gen: v6e
topology: v6e:2x2x1
jax: 0.10.0
libtpu: 0.0.40
codegen_flags: <defaults>
</compile_context>

<pallas_src>
import jax
import jax.numpy as jnp
from jax.experimental import pallas as pl
from jax.experimental.pallas import tpu as pltpu

LOG_STD_MIN = -20.0
LOG_STD_MAX = 2.0
F32_BIG = 3.0e38  # "no-op" clamp bound for mean / padding columns


def _round_up(x, m):
    return (x + m - 1) // m * m


def actor_kernel(s_ref, w1_ref, b1_ref, w2_ref, b2_ref, wh_ref, bh_ref,
                 lo_ref, hi_ref, out_ref):
    # fc1 + ReLU (bf16 operands, f32 accumulation on the MXU)
    x = s_ref[...].astype(jnp.bfloat16)
    h = jnp.dot(x, w1_ref[...], preferred_element_type=jnp.float32) + b1_ref[...]
    h = jnp.maximum(h, 0.0).astype(jnp.bfloat16)

    # fc2 + ReLU
    h = jnp.dot(h, w2_ref[...], preferred_element_type=jnp.float32) + b2_ref[...]
    h = jnp.maximum(h, 0.0).astype(jnp.bfloat16)

    # Fused head: columns [0, A) = mean, [A, 2A) = log_std, rest = zero pad.
    y = jnp.dot(h, wh_ref[...], preferred_element_type=jnp.float32) + bh_ref[...]

    # Per-column clamp: lo/hi are [-20, 2] on the log_std columns and
    # +/- F32_BIG (no-op) everywhere else.
    y = jnp.minimum(jnp.maximum(y, lo_ref[...]), hi_ref[...])

    # Single lane-dense store of the fused output slab (bf16).
    out_ref[...] = y.astype(out_ref.dtype)


def init_actor_params(key, state_dim, action_dim, hidden_dim):
    """Deterministic init mimicking nn.Linear default (uniform +/- 1/sqrt(fan_in))."""
    def linear(k, fan_in, fan_out):
        kw, kb = jax.random.split(k)
        bound = 1.0 / jnp.sqrt(fan_in)
        w = jax.random.uniform(kw, (fan_in, fan_out), jnp.float32, -bound, bound)
        b = jax.random.uniform(kb, (1, fan_out), jnp.float32, -bound, bound)
        return w, b

    k1, k2, k3, k4 = jax.random.split(key, 4)
    w1, b1 = linear(k1, state_dim, hidden_dim)
    w2, b2 = linear(k2, hidden_dim, hidden_dim)
    wm, bm = linear(k3, hidden_dim, action_dim)
    ws, bs = linear(k4, hidden_dim, action_dim)
    return (w1, b1, w2, b2, wm, bm, ws, bs)


def pack_actor_params(params):
    """Zero-pad to lane-friendly sizes, fuse the heads, cast weights to bf16."""
    w1, b1, w2, b2, wm, bm, ws, bs = params
    S, H = w1.shape
    A = wm.shape[1]

    S_pad = _round_up(S, 8)              # K axis of fc1 (state lane dim)
    H_pad = _round_up(H, 128)            # hidden -> lane-dense
    HEAD_PAD = _round_up(2 * A, 128)     # fused head output -> 128 lanes

    def pad2(w, rows, cols):
        return jnp.zeros((rows, cols), jnp.float32).at[:w.shape[0], :w.shape[1]].set(w)

    # Weights in bf16 (zero padding stays exact); biases stay f32 (added to
    # the f32 accumulator).
    w1p = pad2(w1, S_pad, H_pad).astype(jnp.bfloat16)
    w2p = pad2(w2, H_pad, H_pad).astype(jnp.bfloat16)
    whp = jnp.zeros((H_pad, HEAD_PAD), jnp.float32)
    whp = whp.at[:H, :A].set(wm).at[:H, A:2 * A].set(ws).astype(jnp.bfloat16)

    b1p = jnp.zeros((1, H_pad), jnp.float32).at[:, :H].set(b1)
    b2p = jnp.zeros((1, H_pad), jnp.float32).at[:, :H].set(b2)
    bhp = jnp.zeros((1, HEAD_PAD), jnp.float32)
    bhp = bhp.at[:, :A].set(bm).at[:, A:2 * A].set(bs)

    # Per-column clamp bounds: only the log_std columns get [-20, 2].
    lo = jnp.full((1, HEAD_PAD), -F32_BIG, jnp.float32).at[:, A:2 * A].set(LOG_STD_MIN)
    hi = jnp.full((1, HEAD_PAD), F32_BIG, jnp.float32).at[:, A:2 * A].set(LOG_STD_MAX)

    return dict(w1=w1p, b1=b1p, w2=w2p, b2=b2p, wh=whp, bh=bhp, lo=lo, hi=hi,
                state_dim=S, action_dim=A)


def actor_forward(state, packed):
    """Returns (mean, log_std) in float32, matching Actor.forward semantics."""
    w1, b1 = packed["w1"], packed["b1"]
    w2, b2 = packed["w2"], packed["b2"]
    wh, bh = packed["wh"], packed["bh"]
    lo, hi = packed["lo"], packed["hi"]
    A = packed["action_dim"]

    B, S = state.shape
    S_pad, H_pad = w1.shape
    HEAD_PAD = wh.shape[1]

    # Batch tile: up to 512 rows, multiple of 16 (bf16 sublane packing),
    # sized so padding waste is bounded (<= one 16-row remainder per tile) and
    # so the grid has >= 2 steps whenever B >= 32 (lets "parallel" shard the
    # batch axis across v7x's two TensorCores; neutral on v5e/v6e).
    TB_MAX = 512
    n_tiles = max(pl.cdiv(B, TB_MAX), 2 if B >= 32 else 1)
    TB = _round_up(pl.cdiv(B, n_tiles), 16)
    B_pad = _round_up(B, TB)
    if (B_pad != B) or (S_pad != S):
        state = jnp.pad(state, ((0, B_pad - B), (0, S_pad - S)))

    grid = (B_pad // TB,)

    def build(single_buffer_weights):
        def res_spec(shape):
            # Constant index_map -> operand stays resident across grid steps;
            # Buffered(1) drops the pointless second pipeline buffer.
            if single_buffer_weights:
                return pl.BlockSpec(shape, lambda i: (0, 0),
                                    pipeline_mode=pl.Buffered(1))
            return pl.BlockSpec(shape, lambda i: (0, 0))

        return pl.pallas_call(
            actor_kernel,
            out_shape=jax.ShapeDtypeStruct((B_pad, HEAD_PAD), jnp.bfloat16),
            grid=grid,
            in_specs=[
                pl.BlockSpec((TB, S_pad), lambda i: (i, 0)),   # state tile
                res_spec((S_pad, H_pad)),                      # w1 (bf16)
                res_spec((1, H_pad)),                          # b1
                res_spec((H_pad, H_pad)),                      # w2 (bf16)
                res_spec((1, H_pad)),                          # b2
                res_spec((H_pad, HEAD_PAD)),                   # fused head W (bf16)
                res_spec((1, HEAD_PAD)),                       # fused head b
                res_spec((1, HEAD_PAD)),                       # clamp lo
                res_spec((1, HEAD_PAD)),                       # clamp hi
            ],
            out_specs=pl.BlockSpec((TB, HEAD_PAD), lambda i: (i, 0)),
            compiler_params=pltpu.CompilerParams(
                dimension_semantics=("parallel",),
                vmem_limit_bytes=64 * 1024 * 1024),
        )

    args = (state, w1, b1, w2, b2, wh, bh, lo, hi)
    try:
        out = build(True)(*args)
    except Exception:
        # Fallback for runtimes where Buffered(1) on resident operands is not
        # supported: identical kernel, default (double-buffered) specs.
        out = build(False)(*args)

    mean = out[:B, :A].astype(jnp.float32)
    log_std = out[:B, A:2 * A].astype(jnp.float32)
    return mean, log_std


if __name__ == "__main__":
    batch, state_dim, action_dim, hidden_dim = 8, 16, 4, 32

    key = jax.random.PRNGKey(0)
    k_params, k_state = jax.random.split(key)

    params = init_actor_params(k_params, state_dim, action_dim, hidden_dim)
    packed = pack_actor_params(params)
    state = jax.random.normal(k_state, (batch, state_dim), jnp.float32)

    mean, log_std = actor_forward(state, packed)
    jax.block_until_ready((mean, log_std))

    # Pure-JAX f32 reference on the UNPADDED params (same math as the PyTorch
    # forward).  Tolerance is loosened because the kernel uses bf16 weights
    # and a bf16 output slab (f32 accumulation on the MXU).
    w1, b1, w2, b2, wm, bm, ws, bs = params
    h = jnp.maximum(state @ w1 + b1, 0.0)
    h = jnp.maximum(h @ w2 + b2, 0.0)
    mean_ref = h @ wm + bm
    logstd_ref = jnp.clip(h @ ws + bs, -20.0, 2.0)

    assert mean.shape == (batch, action_dim)
    assert log_std.shape == (batch, action_dim)
    assert jnp.allclose(mean, mean_ref, atol=3e-2, rtol=3e-2)
    assert jnp.allclose(log_std, logstd_ref, atol=3e-2, rtol=3e-2)

    print("KERNEL_OK")
</pallas_src>

<mosaic_0001>
module attributes {stable_mosaic.version = 11 : i64} {
  func.func @actor_kernel(%arg0: i32, %arg1: memref<16x16xf32, #tpu.memory_space<vmem>>, %arg2: memref<16x128xbf16, #tpu.memory_space<vmem>>, %arg3: memref<1x128xf32, #tpu.memory_space<vmem>>, %arg4: memref<128x128xbf16, #tpu.memory_space<vmem>>, %arg5: memref<1x128xf32, #tpu.memory_space<vmem>>, %arg6: memref<128x128xbf16, #tpu.memory_space<vmem>>, %arg7: memref<1x128xf32, #tpu.memory_space<vmem>>, %arg8: memref<1x128xf32, #tpu.memory_space<vmem>>, %arg9: memref<1x128xf32, #tpu.memory_space<vmem>>, %arg10: memref<16x128xbf16, #tpu.memory_space<vmem>>) attributes {dimension_semantics = [#tpu.dimension_semantics<parallel>], iteration_bounds = array<i64: 1>, scalar_prefetch = 0 : i64, scratch_operands = 0 : i64, tpu.core_type = #tpu.core_type<tc>, window_params = [{transform_indices = @transform_0, window_bounds = array<i64: 16, 16>}, {pipeline_mode = #tpu.pipeline_mode<synchronous>, transform_indices = @transform_1, window_bounds = array<i64: 16, 128>}, {pipeline_mode = #tpu.pipeline_mode<synchronous>, transform_indices = @transform_2, window_bounds = array<i64: 1, 128>}, {pipeline_mode = #tpu.pipeline_mode<synchronous>, transform_indices = @transform_3, window_bounds = array<i64: 128, 128>}, {pipeline_mode = #tpu.pipeline_mode<synchronous>, transform_indices = @transform_4, window_bounds = array<i64: 1, 128>}, {pipeline_mode = #tpu.pipeline_mode<synchronous>, transform_indices = @transform_5, window_bounds = array<i64: 128, 128>}, {pipeline_mode = #tpu.pipeline_mode<synchronous>, transform_indices = @transform_6, window_bounds = array<i64: 1, 128>}, {pipeline_mode = #tpu.pipeline_mode<synchronous>, transform_indices = @transform_7, window_bounds = array<i64: 1, 128>}, {pipeline_mode = #tpu.pipeline_mode<synchronous>, transform_indices = @transform_8, window_bounds = array<i64: 1, 128>}, {transform_indices = @transform_9, window_bounds = array<i64: 16, 128>}]} {
    %c0 = arith.constant 0 : index
    %c0_0 = arith.constant 0 : index
    %0 = vector.load %arg1[%c0, %c0_0] : memref<16x16xf32, #tpu.memory_space<vmem>>, vector<16x16xf32>
    %1 = arith.truncf %0 : vector<16x16xf32> to vector<16x16xbf16>
    %c0_1 = arith.constant 0 : index
    %c0_2 = arith.constant 0 : index
    %2 = vector.load %arg2[%c0_1, %c0_2] : memref<16x128xbf16, #tpu.memory_space<vmem>>, vector<16x128xbf16>
    %cst = arith.constant dense<0.000000e+00> : vector<16x128xf32>
    %3 = tpu.matmul %1, %2, %cst {dimension_numbers = #tpu.dot_dimension_numbers<[1], [0], [0], [1], [0, 0, 1, 1], [], []>} : vector<16x16xbf16>, vector<16x128xbf16>, vector<16x128xf32> -> vector<16x128xf32>
    %c0_3 = arith.constant 0 : index
    %c0_4 = arith.constant 0 : index
    %4 = vector.load %arg3[%c0_3, %c0_4] : memref<1x128xf32, #tpu.memory_space<vmem>>, vector<1x128xf32>
    %5 = vector.broadcast %4 : vector<1x128xf32> to vector<16x128xf32>
    %6 = arith.addf %3, %5 : vector<16x128xf32>
    %cst_5 = arith.constant 0.000000e+00 : f32
    %7 = vector.broadcast %cst_5 : f32 to vector<16x128xf32>
    %8 = arith.maximumf %6, %7 : vector<16x128xf32>
    %9 = arith.truncf %8 : vector<16x128xf32> to vector<16x128xbf16>
    %c0_6 = arith.constant 0 : index
    %c0_7 = arith.constant 0 : index
    %10 = vector.load %arg4[%c0_6, %c0_7] : memref<128x128xbf16, #tpu.memory_space<vmem>>, vector<128x128xbf16>
    %cst_8 = arith.constant dense<0.000000e+00> : vector<16x128xf32>
    %11 = tpu.matmul %9, %10, %cst_8 {dimension_numbers = #tpu.dot_dimension_numbers<[1], [0], [0], [1], [0, 0, 1, 1], [], []>} : vector<16x128xbf16>, vector<128x128xbf16>, vector<16x128xf32> -> vector<16x128xf32>
    %c0_9 = arith.constant 0 : index
    %c0_10 = arith.constant 0 : index
    %12 = vector.load %arg5[%c0_9, %c0_10] : memref<1x128xf32, #tpu.memory_space<vmem>>, vector<1x128xf32>
    %13 = vector.broadcast %12 : vector<1x128xf32> to vector<16x128xf32>
    %14 = arith.addf %11, %13 : vector<16x128xf32>
    %cst_11 = arith.constant 0.000000e+00 : f32
    %15 = vector.broadcast %cst_11 : f32 to vector<16x128xf32>
    %16 = arith.maximumf %14, %15 : vector<16x128xf32>
    %17 = arith.truncf %16 : vector<16x128xf32> to vector<16x128xbf16>
    %c0_12 = arith.constant 0 : index
    %c0_13 = arith.constant 0 : index
    %18 = vector.load %arg6[%c0_12, %c0_13] : memref<128x128xbf16, #tpu.memory_space<vmem>>, vector<128x128xbf16>
    %cst_14 = arith.constant dense<0.000000e+00> : vector<16x128xf32>
    %19 = tpu.matmul %17, %18, %cst_14 {dimension_numbers = #tpu.dot_dimension_numbers<[1], [0], [0], [1], [0, 0, 1, 1], [], []>} : vector<16x128xbf16>, vector<128x128xbf16>, vector<16x128xf32> -> vector<16x128xf32>
    %c0_15 = arith.constant 0 : index
    %c0_16 = arith.constant 0 : index
    %20 = vector.load %arg7[%c0_15, %c0_16] : memref<1x128xf32, #tpu.memory_space<vmem>>, vector<1x128xf32>
    %21 = vector.broadcast %20 : vector<1x128xf32> to vector<16x128xf32>
    %22 = arith.addf %19, %21 : vector<16x128xf32>
    %c0_17 = arith.constant 0 : index
    %c0_18 = arith.constant 0 : index
    %23 = vector.load %arg8[%c0_17, %c0_18] : memref<1x128xf32, #tpu.memory_space<vmem>>, vector<1x128xf32>
    %24 = vector.broadcast %23 : vector<1x128xf32> to vector<16x128xf32>
    %25 = arith.maximumf %22, %24 : vector<16x128xf32>
    %c0_19 = arith.constant 0 : index
    %c0_20 = arith.constant 0 : index
    %26 = vector.load %arg9[%c0_19, %c0_20] : memref<1x128xf32, #tpu.memory_space<vmem>>, vector<1x128xf32>
    %27 = vector.broadcast %26 : vector<1x128xf32> to vector<16x128xf32>
    %28 = arith.minimumf %25, %27 : vector<16x128xf32>
    %29 = arith.truncf %28 : vector<16x128xf32> to vector<16x128xbf16>
    %c0_21 = arith.constant 0 : index
    %c0_22 = arith.constant 0 : index
    %30 = vector.load %arg10[%c0_21, %c0_22] : memref<16x128xbf16, #tpu.memory_space<vmem>>, vector<16x128xbf16>
    tpu.vector_store %arg10[%c0_21, %c0_22], %29 {strides = array<i32>} : memref<16x128xbf16, #tpu.memory_space<vmem>>, vector<16x128xbf16>,
    return
  }
  func.func @transform_0(%arg0: i32) -> (i32, i32) {
    %c0_i32 = arith.constant 0 : i32
    %c0_i32_0 = arith.constant 0 : i32
    return %arg0, %c0_i32 : i32, i32
  }
  func.func @transform_1(%arg0: i32) -> (i32, i32) {
    %c0_i32 = arith.constant 0 : i32
    %c0_i32_0 = arith.constant 0 : i32
    %c0_i32_1 = arith.constant 0 : i32
    return %c0_i32, %c0_i32_0 : i32, i32
  }
  func.func @transform_2(%arg0: i32) -> (i32, i32) {
    %c0_i32 = arith.constant 0 : i32
    %c0_i32_0 = arith.constant 0 : i32
    %c0_i32_1 = arith.constant 0 : i32
    return %c0_i32, %c0_i32_0 : i32, i32
  }
  func.func @transform_3(%arg0: i32) -> (i32, i32) {
    %c0_i32 = arith.constant 0 : i32
    %c0_i32_0 = arith.constant 0 : i32
    %c0_i32_1 = arith.constant 0 : i32
    return %c0_i32, %c0_i32_0 : i32, i32
  }
  func.func @transform_4(%arg0: i32) -> (i32, i32) {
    %c0_i32 = arith.constant 0 : i32
    %c0_i32_0 = arith.constant 0 : i32
    %c0_i32_1 = arith.constant 0 : i32
    return %c0_i32, %c0_i32_0 : i32, i32
  }
  func.func @transform_5(%arg0: i32) -> (i32, i32) {
    %c0_i32 = arith.constant 0 : i32
    %c0_i32_0 = arith.constant 0 : i32
    %c0_i32_1 = arith.constant 0 : i32
    return %c0_i32, %c0_i32_0 : i32, i32
  }
  func.func @transform_6(%arg0: i32) -> (i32, i32) {
    %c0_i32 = arith.constant 0 : i32
    %c0_i32_0 = arith.constant 0 : i32
    %c0_i32_1 = arith.constant 0 : i32
    return %c0_i32, %c0_i32_0 : i32, i32
  }
  func.func @transform_7(%arg0: i32) -> (i32, i32) {
    %c0_i32 = arith.constant 0 : i32
    %c0_i32_0 = arith.constant 0 : i32
    %c0_i32_1 = arith.constant 0 : i32
    return %c0_i32, %c0_i32_0 : i32, i32
  }
  func.func @transform_8(%arg0: i32) -> (i32, i32) {
    %c0_i32 = arith.constant 0 : i32
    %c0_i32_0 = arith.constant 0 : i32
    %c0_i32_1 = arith.constant 0 : i32
    return %c0_i32, %c0_i32_0 : i32, i32
  }
  func.func @transform_9(%arg0: i32) -> (i32, i32) {
    %c0_i32 = arith.constant 0 : i32
    %c0_i32_0 = arith.constant 0 : i32
    return %arg0, %c0_i32 : i32, i32
  }
}

module attributes {stable_mosaic.version = 11 : i64} {
  func.func @actor_kernel(%arg0: i32, %arg1: memref<16x16xf32, #tpu.memory_space<vmem>>, %arg2: memref<16x128xbf16, #tpu.memory_space<vmem>>, %arg3: memref<1x128xf32, #tpu.memory_space<vmem>>, %arg4: memref<128x128xbf16, #tpu.memory_space<vmem>>, %arg5: memref<1x128xf32, #tpu.memory_space<vmem>>, %arg6: memref<128x128xbf16, #tpu.memory_space<vmem>>, %arg7: memref<1x128xf32, #tpu.memory_space<vmem>>, %arg8: memref<1x128xf32, #tpu.memory_space<vmem>>, %arg9: memref<1x128xf32, #tpu.memory_space<vmem>>, %arg10: memref<16x128xbf16, #tpu.memory_space<vmem>>) attributes {dimension_semantics = [#tpu.dimension_semantics<parallel>], iteration_bounds = array<i64: 1>, scalar_prefetch = 0 : i64, scratch_operands = 0 : i64, tpu.core_type = #tpu.core_type<tc>, window_params = [{transform_indices = @transform_0, window_bounds = array<i64: 16, 16>}, {pipeline_mode = #tpu.pipeline_mode<synchronous>, transform_indices = @transform_1, window_bounds = array<i64: 16, 128>}, {pipeline_mode = #tpu.pipeline_mode<synchronous>, transform_indices = @transform_2, window_bounds = array<i64: 1, 128>}, {pipeline_mode = #tpu.pipeline_mode<synchronous>, transform_indices = @transform_3, window_bounds = array<i64: 128, 128>}, {pipeline_mode = #tpu.pipeline_mode<synchronous>, transform_indices = @transform_4, window_bounds = array<i64: 1, 128>}, {pipeline_mode = #tpu.pipeline_mode<synchronous>, transform_indices = @transform_5, window_bounds = array<i64: 128, 128>}, {pipeline_mode = #tpu.pipeline_mode<synchronous>, transform_indices = @transform_6, window_bounds = array<i64: 1, 128>}, {pipeline_mode = #tpu.pipeline_mode<synchronous>, transform_indices = @transform_7, window_bounds = array<i64: 1, 128>}, {pipeline_mode = #tpu.pipeline_mode<synchronous>, transform_indices = @transform_8, window_bounds = array<i64: 1, 128>}, {transform_indices = @transform_9, window_bounds = array<i64: 16, 128>}]} {
    %c0 = arith.constant 0 : index
    %c0_0 = arith.constant 0 : index
    %0 = vector.load %arg1[%c0, %c0_0] : memref<16x16xf32, #tpu.memory_space<vmem>>, vector<16x16xf32>
    %1 = arith.truncf %0 : vector<16x16xf32> to vector<16x16xbf16>
    %c0_1 = arith.constant 0 : index
    %c0_2 = arith.constant 0 : index
    %2 = vector.load %arg2[%c0_1, %c0_2] : memref<16x128xbf16, #tpu.memory_space<vmem>>, vector<16x128xbf16>
    %cst = arith.constant dense<0.000000e+00> : vector<16x128xf32>
    %3 = tpu.matmul %1, %2, %cst {dimension_numbers = #tpu.dot_dimension_numbers<[1], [0], [0], [1], [0, 0, 1, 1], [], []>} : vector<16x16xbf16>, vector<16x128xbf16>, vector<16x128xf32> -> vector<16x128xf32>
    %c0_3 = arith.constant 0 : index
    %c0_4 = arith.constant 0 : index
    %4 = vector.load %arg3[%c0_3, %c0_4] : memref<1x128xf32, #tpu.memory_space<vmem>>, vector<1x128xf32>
    %5 = vector.broadcast %4 : vector<1x128xf32> to vector<16x128xf32>
    %6 = arith.addf %3, %5 : vector<16x128xf32>
    %cst_5 = arith.constant 0.000000e+00 : f32
    %7 = vector.broadcast %cst_5 : f32 to vector<16x128xf32>
    %8 = arith.maximumf %6, %7 : vector<16x128xf32>
    %9 = arith.truncf %8 : vector<16x128xf32> to vector<16x128xbf16>
    %c0_6 = arith.constant 0 : index
    %c0_7 = arith.constant 0 : index
    %10 = vector.load %arg4[%c0_6, %c0_7] : memref<128x128xbf16, #tpu.memory_space<vmem>>, vector<128x128xbf16>
    %cst_8 = arith.constant dense<0.000000e+00> : vector<16x128xf32>
    %11 = tpu.matmul %9, %10, %cst_8 {dimension_numbers = #tpu.dot_dimension_numbers<[1], [0], [0], [1], [0, 0, 1, 1], [], []>} : vector<16x128xbf16>, vector<128x128xbf16>, vector<16x128xf32> -> vector<16x128xf32>
    %c0_9 = arith.constant 0 : index
    %c0_10 = arith.constant 0 : index
    %12 = vector.load %arg5[%c0_9, %c0_10] : memref<1x128xf32, #tpu.memory_space<vmem>>, vector<1x128xf32>
    %13 = vector.broadcast %12 : vector<1x128xf32> to vector<16x128xf32>
    %14 = arith.addf %11, %13 : vector<16x128xf32>
    %cst_11 = arith.constant 0.000000e+00 : f32
    %15 = vector.broadcast %cst_11 : f32 to vector<16x128xf32>
    %16 = arith.maximumf %14, %15 : vector<16x128xf32>
    %17 = arith.truncf %16 : vector<16x128xf32> to vector<16x128xbf16>
    %c0_12 = arith.constant 0 : index
    %c0_13 = arith.constant 0 : index
    %18 = vector.load %arg6[%c0_12, %c0_13] : memref<128x128xbf16, #tpu.memory_space<vmem>>, vector<128x128xbf16>
    %cst_14 = arith.constant dense<0.000000e+00> : vector<16x128xf32>
    %19 = tpu.matmul %17, %18, %cst_14 {dimension_numbers = #tpu.dot_dimension_numbers<[1], [0], [0], [1], [0, 0, 1, 1], [], []>} : vector<16x128xbf16>, vector<128x128xbf16>, vector<16x128xf32> -> vector<16x128xf32>
    %c0_15 = arith.constant 0 : index
    %c0_16 = arith.constant 0 : index
    %20 = vector.load %arg7[%c0_15, %c0_16] : memref<1x128xf32, #tpu.memory_space<vmem>>, vector<1x128xf32>
    %21 = vector.broadcast %20 : vector<1x128xf32> to vector<16x128xf32>
    %22 = arith.addf %19, %21 : vector<16x128xf32>
    %c0_17 = arith.constant 0 : index
    %c0_18 = arith.constant 0 : index
    %23 = vector.load %arg8[%c0_17, %c0_18] : memref<1x128xf32, #tpu.memory_space<vmem>>, vector<1x128xf32>
    %24 = vector.broadcast %23 : vector<1x128xf32> to vector<16x128xf32>
    %25 = arith.maximumf %22, %24 : vector<16x128xf32>
    %c0_19 = arith.constant 0 : index
    %c0_20 = arith.constant 0 : index
    %26 = vector.load %arg9[%c0_19, %c0_20] : memref<1x128xf32, #tpu.memory_space<vmem>>, vector<1x128xf32>
    %27 = vector.broadcast %26 : vector<1x128xf32> to vector<16x128xf32>
    %28 = arith.minimumf %25, %27 : vector<16x128xf32>
    %29 = arith.truncf %28 : vector<16x128xf32> to vector<16x128xbf16>
    %c0_21 = arith.constant 0 : index
    %c0_22 = arith.constant 0 : index
    %30 = vector.load %arg10[%c0_21, %c0_22] : memref<16x128xbf16, #tpu.memory_space<vmem>>, vector<16x128xbf16>
    tpu.vector_store %arg10[%c0_21, %c0_22], %29 {strides = array<i32>} : memref<16x128xbf16, #tpu.memory_space<vmem>>, vector<16x128xbf16>,
    return
  }
  func.func @transform_0(%arg0: i32) -> (i32, i32) {
    %c0_i32 = arith.constant 0 : i32
    %c0_i32_0 = arith.constant 0 : i32
    return %arg0, %c0_i32 : i32, i32
  }
  func.func @transform_1(%arg0: i32) -> (i32, i32) {
    %c0_i32 = arith.constant 0 : i32
    %c0_i32_0 = arith.constant 0 : i32
    %c0_i32_1 = arith.constant 0 : i32
    return %c0_i32, %c0_i32_0 : i32, i32
  }
  func.func @transform_2(%arg0: i32) -> (i32, i32) {
    %c0_i32 = arith.constant 0 : i32
    %c0_i32_0 = arith.constant 0 : i32
    %c0_i32_1 = arith.constant 0 : i32
    return %c0_i32, %c0_i32_0 : i32, i32
  }
  func.func @transform_3(%arg0: i32) -> (i32, i32) {
    %c0_i32 = arith.constant 0 : i32
    %c0_i32_0 = arith.constant 0 : i32
    %c0_i32_1 = arith.constant 0 : i32
    return %c0_i32, %c0_i32_0 : i32, i32
  }
  func.func @transform_4(%arg0: i32) -> (i32, i32) {
    %c0_i32 = arith.constant 0 : i32
    %c0_i32_0 = arith.constant 0 : i32
    %c0_i32_1 = arith.constant 0 : i32
    return %c0_i32, %c0_i32_0 : i32, i32
  }
  func.func @transform_5(%arg0: i32) -> (i32, i32) {
    %c0_i32 = arith.constant 0 : i32
    %c0_i32_0 = arith.constant 0 : i32
    %c0_i32_1 = arith.constant 0 : i32
    return %c0_i32, %c0_i32_0 : i32, i32
  }
  func.func @transform_6(%arg0: i32) -> (i32, i32) {
    %c0_i32 = arith.constant 0 : i32
    %c0_i32_0 = arith.constant 0 : i32
    %c0_i32_1 = arith.constant 0 : i32
    return %c0_i32, %c0_i32_0 : i32, i32
  }
  func.func @transform_7(%arg0: i32) -> (i32, i32) {
    %c0_i32 = arith.constant 0 : i32
    %c0_i32_0 = arith.constant 0 : i32
    %c0_i32_1 = arith.constant 0 : i32
    return %c0_i32, %c0_i32_0 : i32, i32
  }
  func.func @transform_8(%arg0: i32) -> (i32, i32) {
    %c0_i32 = arith.constant 0 : i32
    %c0_i32_0 = arith.constant 0 : i32
    %c0_i32_1 = arith.constant 0 : i32
    return %c0_i32, %c0_i32_0 : i32, i32
  }
  func.func @transform_9(%arg0: i32) -> (i32, i32) {
    %c0_i32 = arith.constant 0 : i32
    %c0_i32_0 = arith.constant 0 : i32
    return %arg0, %c0_i32 : i32, i32
  }
}

</mosaic_0001>

<llo_original>
// kernel: tpu_custom_call.1
$region0: #{tpu_custom_call.1}
  #allocation0 [shape = 'u32[]', space=smem, size = 0x4, offset = 0x4, fixed_abs, tag = 'smem constant byte address 0x4 - core index']
  #allocation1 [shape = 'u32[144,128]{1,0:T(1,128)}', space=vmem, size = 0x12000, scoped, tag = 'internal scratch']
  %s0 = inlined_call_operand.hbm [shape: f32[16,16], index: 0, kind: input, shape index: {}]
  %s1 = inlined_call_operand.hbm [shape: bf16[16,128], index: 1, kind: input, shape index: {}]
  %s2 = inlined_call_operand.vmem [shape: f32[1,128], index: 2, kind: input, shape index: {}]
  %s3 = inlined_call_operand.hbm [shape: bf16[128,128], index: 3, kind: input, shape index: {}]
  %s4 = inlined_call_operand.vmem [shape: f32[1,128], index: 4, kind: input, shape index: {}]
  %s5 = inlined_call_operand.hbm [shape: bf16[128,128], index: 5, kind: input, shape index: {}]
  %s6 = inlined_call_operand.vmem [shape: f32[1,128], index: 6, kind: input, shape index: {}]
  %s7 = inlined_call_operand.vmem [shape: f32[1,128], index: 7, kind: input, shape index: {}]
  %s8 = inlined_call_operand.vmem [shape: f32[1,128], index: 8, kind: input, shape index: {}]
  %s9 = inlined_call_operand.hbm [shape: bf16[16,128], index: 9, kind: output, shape index: {}]
  %s10 = sld [smem:[#allocation0]]
  $region62: #{tpu_custom_call.1} parent=0
    _
  %s12 = ssub.s32 1, %s10
  %s13 = scalar_select 0, %s12, %s10
  $region1: #{tpu_custom_call.1} parent=0
    #allocation2 [shape = 'u8[8192]{0}', space=vmem, size = 0x2000, scoped, tag = 'input window, operand 0, single buffered']
    #allocation3 [shape = 's32[1]{0}', space=sflag, size = 0x4, scoped, tag = 'scoped memory for tpu_custom_call.1']
    #allocation4 [shape = 's32[1]{0}', space=sflag, size = 0x4, scoped, tag = 'scoped memory for tpu_custom_call.1']
    #allocation5 [shape = 'u8[4096]{0}', space=vmem, size = 0x1000, scoped, tag = 'input window, operand 1, single buffered']
    #allocation6 [shape = 's32[1]{0}', space=sflag, size = 0x4, scoped, tag = 'scoped memory for tpu_custom_call.1']
    #allocation7 [shape = 'u8[32768]{0}', space=vmem, size = 0x8000, scoped, tag = 'input window, operand 3, single buffered']
    #allocation8 [shape = 'u8[32768]{0}', space=vmem, size = 0x8000, scoped, tag = 'input window, operand 5, single buffered']
    #allocation9 [shape = 's32[1]{0}', space=sflag, size = 0x4, scoped, tag = 'scoped memory for tpu_custom_call.1']
    #allocation10 [shape = 'u8[4096]{0}', space=vmem, size = 0x1000, scoped, tag = 'output window, operand 0, single buffered']
    %14 = vsyncpa [#allocation3], 0
    %15 = vsyncpa [#allocation6], 0
    %16 = vsyncpa [#allocation9], 0
    %17 = vsyncpa [#allocation4], 0
    // Predicated region
    $region2: #{tpu_custom_call.1} parent=1 // pred_check
      _
    $region3: #{tpu_custom_call.1} parent=1 // pred_check_branch
      %19 = sbr.rel (0) target = $region5
    $region4: #{tpu_custom_call.1} parent=1 // pred_region
      %s21 = ssub.s32 256, 256
      %22 = vsyncadd [#allocation3], %s21
      %s23 = sshll.u32 [#allocation2], 4
      %s24 = int_to_ptr.vmem [resolvable:$true] %s23
      %29 = dma.hbm_to_vmem [thread:$0]  %s0, 256, %s24, [#allocation3], 128, 128, 8
    $region5: #{tpu_custom_call.1} parent=1 // pred_fallthru
      _
    // Predicated region
    $region6: #{tpu_custom_call.1} parent=1 // pred_check
      _
    $region7: #{tpu_custom_call.1} parent=1 // pred_check_branch
      %31 = sbr.rel (0) target = $region9
    $region8: #{tpu_custom_call.1} parent=1 // pred_region
      %s33 = ssub.s32 128, 128
      %34 = vsyncadd [#allocation6], %s33
      %s35 = sshll.u32 [#allocation5], 4
      %s36 = int_to_ptr.vmem [resolvable:$true] %s35
      %41 = dma.hbm_to_vmem [thread:$0]  %s1, 128, %s36, [#allocation6], 64, 64, 4
    $region9: #{tpu_custom_call.1} parent=1 // pred_fallthru
      _
    // Predicated region
    $region10: #{tpu_custom_call.1} parent=1 // pred_check
      _
    $region11: #{tpu_custom_call.1} parent=1 // pred_check_branch
      %43 = sbr.rel (0) target = $region13
    $region12: #{tpu_custom_call.1} parent=1 // pred_region
      _
    $region13: #{tpu_custom_call.1} parent=1 // pred_fallthru
      _
    // Predicated region
    $region14: #{tpu_custom_call.1} parent=1 // pred_check
      _
    $region15: #{tpu_custom_call.1} parent=1 // pred_check_branch
      %45 = sbr.rel (0) target = $region17
    $region16: #{tpu_custom_call.1} parent=1 // pred_region
      %s47 = ssub.s32 1024, 1024
      %48 = vsyncadd [#allocation6], %s47
      %s49 = sshll.u32 [#allocation7], 4
      %s50 = int_to_ptr.vmem [resolvable:$true] %s49
      %55 = dma.hbm_to_vmem [thread:$0]  %s3, 1024, %s50, [#allocation6], 64, 64, 4
    $region17: #{tpu_custom_call.1} parent=1 // pred_fallthru
      _
    // Predicated region
    $region18: #{tpu_custom_call.1} parent=1 // pred_check
      _
    $region19: #{tpu_custom_call.1} parent=1 // pred_check_branch
      %57 = sbr.rel (0) target = $region21
    $region20: #{tpu_custom_call.1} parent=1 // pred_region
      _
    $region21: #{tpu_custom_call.1} parent=1 // pred_fallthru
      _
    // Predicated region
    $region22: #{tpu_custom_call.1} parent=1 // pred_check
      _
    $region23: #{tpu_custom_call.1} parent=1 // pred_check_branch
      %59 = sbr.rel (0) target = $region25
    $region24: #{tpu_custom_call.1} parent=1 // pred_region
      %s61 = ssub.s32 1024, 1024
      %62 = vsyncadd [#allocation9], %s61
      %s63 = sshll.u32 [#allocation8], 4
      %s64 = int_to_ptr.vmem [resolvable:$true] %s63
      %69 = dma.hbm_to_vmem [thread:$0]  %s5, 1024, %s64, [#allocation9], 64, 64, 4
    $region25: #{tpu_custom_call.1} parent=1 // pred_fallthru
      _
    // Predicated region
    $region26: #{tpu_custom_call.1} parent=1 // pred_check
      _
    $region27: #{tpu_custom_call.1} parent=1 // pred_check_branch
      %71 = sbr.rel (0) target = $region29
    $region28: #{tpu_custom_call.1} parent=1 // pred_region
      _
    $region29: #{tpu_custom_call.1} parent=1 // pred_fallthru
      _
    // Predicated region
    $region30: #{tpu_custom_call.1} parent=1 // pred_check
      _
    $region31: #{tpu_custom_call.1} parent=1 // pred_check_branch
      %73 = sbr.rel (0) target = $region33
    $region32: #{tpu_custom_call.1} parent=1 // pred_region
      _
    $region33: #{tpu_custom_call.1} parent=1 // pred_fallthru
      _
    // Predicated region
    $region34: #{tpu_custom_call.1} parent=1 // pred_check
      _
    $region35: #{tpu_custom_call.1} parent=1 // pred_check_branch
      %75 = sbr.rel (0) target = $region37
    $region36: #{tpu_custom_call.1} parent=1 // pred_region
      _
    $region37: #{tpu_custom_call.1} parent=1 // pred_fallthru
      _
    // Predicated region
    $region38: #{tpu_custom_call.1} parent=1 // pred_check
      _
    $region39: #{tpu_custom_call.1} parent=1 // pred_check_branch
      %77 = sbr.rel (0) target = $region41
    $region40: #{tpu_custom_call.1} parent=1 // pred_region
      %78 = dma.done [#allocation3], 256
    $region41: #{tpu_custom_call.1} parent=1 // pred_fallthru
      _
    // Predicated region
    $region42: #{tpu_custom_call.1} parent=1 // pred_check
      _
    $region43: #{tpu_custom_call.1} parent=1 // pred_check_branch
      %80 = sbr.rel (0) target = $region45
    $region44: #{tpu_custom_call.1} parent=1 // pred_region
      %81 = dma.done [#allocation6], 128
    $region45: #{tpu_custom_call.1} parent=1 // pred_fallthru
      _
    // Predicated region
    $region46: #{tpu_custom_call.1} parent=1 // pred_check
      _
    $region47: #{tpu_custom_call.1} parent=1 // pred_check_branch
      %83 = sbr.rel (0) target = $region49
    $region48: #{tpu_custom_call.1} parent=1 // pred_region
      %84 = dma.done [#allocation6], 1024
    $region49: #{tpu_custom_call.1} parent=1 // pred_fallthru
      _
    // Predicated region
    $region50: #{tpu_custom_call.1} parent=1 // pred_check
      _
    $region51: #{tpu_custom_call.1} parent=1 // pred_check_branch
      %86 = sbr.rel (0) target = $region53
    $region52: #{tpu_custom_call.1} parent=1 // pred_region
      %87 = dma.done [#allocation9], 1024
    $region53: #{tpu_custom_call.1} parent=1 // pred_fallthru
      _
    %v89 = vld [vmem:[#allocation2] sm:$0xff]
    %v90 = vld [vmem:[#allocation2 + $0x8] sm:$0xff]
    %v91 = vpack.c.bf16 %v90, %v89
    %v92 = vld [vmem:[#allocation5] sm:$0xf]
    %v93 = vld [vmem:[#allocation5 + $0x4] sm:$0xf]
    %v94 = vld [vmem:[%s2] sm:$0x1]
    %v96 = vlaneseq
    %v97 = vshrl.u32 %v96, 7
    %v98 = vsub.s32 0, %v97
    %v99 = vrot.slane %v94, %v98
    %v103 = vunpack.c.l.b16 %v92
    %v104 = vunpack.c.l.b16 %v93
    %v105 = vpack.c.b16 %v104, %v103
    %vm107 = vcmask 130048
    %v109 = vsel %vm107, %v91, 0
    %111 = vmatprep.subr.bf16.mxu0 0
    %112 = vmatpush1.bf16.msra.mxu0 0
    %113 = vmatprep.subr.bf16.mxu0 0
    %114 = vmatpush1.bf16.msra.mxu0 0
    %115 = vmatprep.subr.bf16.mxu0 0
    %116 = vmatpush1.bf16.msra.mxu0 0
    %117 = vmatprep.subr.bf16.mxu0 0
    %118 = vmatpush1.bf16.msra.mxu0 0
    %119 = vmatprep.subr.bf16.mxu0 0
    %120 = vmatpush1.bf16.msra.mxu0 0
    %121 = vmatprep.subr.bf16.mxu0 0
    %122 = vmatpush1.bf16.msra.mxu0 0
    %123 = vmatprep.subr.bf16.mxu0 0
    %124 = vmatpush1.bf16.msra.mxu0 0
    %125 = vmatprep.subr.bf16.mxu0 0
    %126 = vmatpush1.bf16.msra.mxu0 %v105
    %127 = vmatprep.subr.bf16.mxu0 0
    %128 = vmatpush2.bf16.msra.mxu0 0
    %129 = vmatprep.subr.bf16.mxu0 0
    %130 = vmatpush2.bf16.msra.mxu0 0
    %131 = vmatprep.subr.bf16.mxu0 0
    %132 = vmatpush2.bf16.msra.mxu0 0
    %133 = vmatprep.subr.bf16.mxu0 0
    %134 = vmatpush2.bf16.msra.mxu0 0
    %135 = vmatprep.subr.bf16.mxu0 0
    %136 = vmatpush2.bf16.msra.mxu0 0
    %137 = vmatprep.subr.bf16.mxu0 0
    %138 = vmatpush2.bf16.msra.mxu0 0
    %139 = vmatprep.subr.bf16.mxu0 0
    %140 = vmatpush2.bf16.msra.mxu0 0
    %141 = vmatprep.subr.bf16.mxu0 0
    %142 = vmatpush2.bf16.msra.mxu0 0
    %143 = vmatprep.mubr.bf16.mxu0 0
    %144 = vmatmul.mubr.bf16.gmra.mxu0 %v109
    %v145 = vpop.f32.mrf.mxu0
    %v146 = vadd.f32 %v99, %v145
    %v147 = vpop.f32.mrf.mxu0
    %v148 = vpop.f32.mrf.mxu0
    %v149 = vadd.f32 %v99, %v148
    %v150 = vpop.f32.mrf.mxu0
    %151 = vdwg.mxu0
    %v152 = vmax.f32 %v146, 0.0
    %v153 = vmax.f32 %v149, 0.0
    %v154 = vpack.c.bf16 %v153, %v152
    %v155 = vld [vmem:[#allocation7] sm:$0xf]
    %v156 = vld [vmem:[#allocation7 + $0x4] sm:$0xf]
    %v157 = vld [vmem:[#allocation7 + $0x8] sm:$0xf]
    %v158 = vld [vmem:[#allocation7 + $0xc] sm:$0xf]
    %v159 = vld [vmem:[#allocation7 + $0x10] sm:$0xf]
    %v160 = vld [vmem:[#allocation7 + $0x14] sm:$0xf]
    %v161 = vld [vmem:[#allocation7 + $0x18] sm:$0xf]
    %v162 = vld [vmem:[#allocation7 + $0x1c] sm:$0xf]
    %v163 = vld [vmem:[#allocation7 + $0x20] sm:$0xf]
    %v164 = vld [vmem:[#allocation7 + $0x24] sm:$0xf]
    %v165 = vld [vmem:[#allocation7 + $0x28] sm:$0xf]
    %v166 = vld [vmem:[#allocation7 + $0x2c] sm:$0xf]
    %v167 = vld [vmem:[#allocation7 + $0x30] sm:$0xf]
    %v168 = vld [vmem:[#allocation7 + $0x34] sm:$0xf]
    %v169 = vld [vmem:[#allocation7 + $0x38] sm:$0xf]
    %v170 = vld [vmem:[#allocation7 + $0x3c] sm:$0xf]
    %v171 = vld [vmem:[%s4] sm:$0x1]
    %v173 = vlaneseq
    %v174 = vshrl.u32 %v173, 7
    %v175 = vsub.s32 0, %v174
    %v176 = vrot.slane %v171, %v175
    %v194 = vunpack.c.l.b16 %v155
    %v195 = vunpack.c.l.b16 %v156
    %v196 = vunpack.c.l.b16 %v157
    %v197 = vunpack.c.l.b16 %v158
    %v198 = vunpack.c.l.b16 %v159
    %v199 = vunpack.c.l.b16 %v160
    %v200 = vunpack.c.l.b16 %v161
    %v201 = vunpack.c.l.b16 %v162
    %v202 = vunpack.c.l.b16 %v163
    %v203 = vunpack.c.l.b16 %v164
    %v204 = vunpack.c.l.b16 %v165
    %v205 = vunpack.c.l.b16 %v166
    %v206 = vunpack.c.l.b16 %v167
    %v207 = vunpack.c.l.b16 %v168
    %v208 = vunpack.c.l.b16 %v169
    %v209 = vunpack.c.l.b16 %v170
    %v210 = vpack.c.b16 %v195, %v194
    %v211 = vpack.c.b16 %v197, %v196
    %v212 = vpack.c.b16 %v199, %v198
    %v213 = vpack.c.b16 %v201, %v200
    %v214 = vpack.c.b16 %v203, %v202
    %v215 = vpack.c.b16 %v205, %v204
    %v216 = vpack.c.b16 %v207, %v206
    %v217 = vpack.c.b16 %v209, %v208
    %226 = vmatprep.subr.bf16.mxu0 0
    %227 = vmatpush1.bf16.msra.mxu0 %v217
    %228 = vmatprep.subr.bf16.mxu0 0
    %229 = vmatpush1.bf16.msra.mxu0 %v216
    %230 = vmatprep.subr.bf16.mxu0 0
    %231 = vmatpush1.bf16.msra.mxu0 %v215
    %232 = vmatprep.subr.bf16.mxu0 0
    %233 = vmatpush1.bf16.msra.mxu0 %v214
    %234 = vmatprep.subr.bf16.mxu0 0
    %235 = vmatpush1.bf16.msra.mxu0 %v213
    %236 = vmatprep.subr.bf16.mxu0 0
    %237 = vmatpush1.bf16.msra.mxu0 %v212
    %238 = vmatprep.subr.bf16.mxu0 0
    %239 = vmatpush1.bf16.msra.mxu0 %v211
    %240 = vmatprep.subr.bf16.mxu0 0
    %241 = vmatpush1.bf16.msra.mxu0 %v210
    %242 = vmatprep.subr.bf16.mxu0 0
    %243 = vmatpush2.bf16.msra.mxu0 0
    %244 = vmatprep.subr.bf16.mxu0 0
    %245 = vmatpush2.bf16.msra.mxu0 0
    %246 = vmatprep.subr.bf16.mxu0 0
    %247 = vmatpush2.bf16.msra.mxu0 0
    %248 = vmatprep.subr.bf16.mxu0 0
    %249 = vmatpush2.bf16.msra.mxu0 0
    %250 = vmatprep.subr.bf16.mxu0 0
    %251 = vmatpush2.bf16.msra.mxu0 0
    %252 = vmatprep.subr.bf16.mxu0 0
    %253 = vmatpush2.bf16.msra.mxu0 0
    %254 = vmatprep.subr.bf16.mxu0 0
    %255 = vmatpush2.bf16.msra.mxu0 0
    %256 = vmatprep.subr.bf16.mxu0 0
    %257 = vmatpush2.bf16.msra.mxu0 0
    %258 = vmatprep.mubr.bf16.mxu0 0
    %259 = vmatmul.mubr.bf16.gmra.mxu0 %v154
    %v260 = vpop.f32.mrf.mxu0
    %v261 = vadd.f32 %v176, %v260
    %v262 = vpop.f32.mrf.mxu0
    %v263 = vpop.f32.mrf.mxu0
    %v264 = vadd.f32 %v176, %v263
    %v265 = vpop.f32.mrf.mxu0
    %266 = vdwg.mxu0
    %v267 = vmax.f32 %v261, 0.0
    %v268 = vmax.f32 %v264, 0.0
    %v269 = vpack.c.bf16 %v268, %v267
    %v270 = vld [vmem:[#allocation8] sm:$0xf]
    %v271 = vld [vmem:[#allocation8 + $0x4] sm:$0xf]
    %v272 = vld [vmem:[#allocation8 + $0x8] sm:$0xf]
    %v273 = vld [vmem:[#allocation8 + $0xc] sm:$0xf]
    %v274 = vld [vmem:[#allocation8 + $0x10] sm:$0xf]
    %v275 = vld [vmem:[#allocation8 + $0x14] sm:$0xf]
    %v276 = vld [vmem:[#allocation8 + $0x18] sm:$0xf]
    %v277 = vld [vmem:[#allocation8 + $0x1c] sm:$0xf]
    %v278 = vld [vmem:[#allocation8 + $0x20] sm:$0xf]
    %v279 = vld [vmem:[#allocation8 + $0x24] sm:$0xf]
    %v280 = vld [vmem:[#allocation8 + $0x28] sm:$0xf]
    %v281 = vld [vmem:[#allocation8 + $0x2c] sm:$0xf]
    %v282 = vld [vmem:[#allocation8 + $0x30] sm:$0xf]
    %v283 = vld [vmem:[#allocation8 + $0x34] sm:$0xf]
    %v284 = vld [vmem:[#allocation8 + $0x38] sm:$0xf]
    %v285 = vld [vmem:[#allocation8 + $0x3c] sm:$0xf]
    %v286 = vld [vmem:[%s6] sm:$0x1]
    %v288 = vlaneseq
    %v289 = vshrl.u32 %v288, 7
    %v290 = vsub.s32 0, %v289
    %v291 = vrot.slane %v286, %v290
    %v309 = vunpack.c.l.b16 %v270
    %v310 = vunpack.c.l.b16 %v271
    %v311 = vunpack.c.l.b16 %v272
    %v312 = vunpack.c.l.b16 %v273
    %v313 = vunpack.c.l.b16 %v274
    %v314 = vunpack.c.l.b16 %v275
    %v315 = vunpack.c.l.b16 %v276
    %v316 = vunpack.c.l.b16 %v277
    %v317 = vunpack.c.l.b16 %v278
    %v318 = vunpack.c.l.b16 %v279
    %v319 = vunpack.c.l.b16 %v280
    %v320 = vunpack.c.l.b16 %v281
    %v321 = vunpack.c.l.b16 %v282
    %v322 = vunpack.c.l.b16 %v283
    %v323 = vunpack.c.l.b16 %v284
    %v324 = vunpack.c.l.b16 %v285
    %v325 = vpack.c.b16 %v310, %v309
    %v326 = vpack.c.b16 %v312, %v311
    %v327 = vpack.c.b16 %v314, %v313
    %v328 = vpack.c.b16 %v316, %v315
    %v329 = vpack.c.b16 %v318, %v317
    %v330 = vpack.c.b16 %v320, %v319
    %v331 = vpack.c.b16 %v322, %v321
    %v332 = vpack.c.b16 %v324, %v323
    %341 = vmatprep.subr.bf16.mxu0 0
    %342 = vmatpush1.bf16.msra.mxu0 %v332
    %343 = vmatprep.subr.bf16.mxu0 0
    %344 = vmatpush1.bf16.msra.mxu0 %v331
    %345 = vmatprep.subr.bf16.mxu0 0
    %346 = vmatpush1.bf16.msra.mxu0 %v330
    %347 = vmatprep.subr.bf16.mxu0 0
    %348 = vmatpush1.bf16.msra.mxu0 %v329
    %349 = vmatprep.subr.bf16.mxu0 0
    %350 = vmatpush1.bf16.msra.mxu0 %v328
    %351 = vmatprep.subr.bf16.mxu0 0
    %352 = vmatpush1.bf16.msra.mxu0 %v327
    %353 = vmatprep.subr.bf16.mxu0 0
    %354 = vmatpush1.bf16.msra.mxu0 %v326
    %355 = vmatprep.subr.bf16.mxu0 0
    %356 = vmatpush1.bf16.msra.mxu0 %v325
    %357 = vmatprep.subr.bf16.mxu0 0
    %358 = vmatpush2.bf16.msra.mxu0 0
    %359 = vmatprep.subr.bf16.mxu0 0
    %360 = vmatpush2.bf16.msra.mxu0 0
    %361 = vmatprep.subr.bf16.mxu0 0
    %362 = vmatpush2.bf16.msra.mxu0 0
    %363 = vmatprep.subr.bf16.mxu0 0
    %364 = vmatpush2.bf16.msra.mxu0 0
    %365 = vmatprep.subr.bf16.mxu0 0
    %366 = vmatpush2.bf16.msra.mxu0 0
    %367 = vmatprep.subr.bf16.mxu0 0
    %368 = vmatpush2.bf16.msra.mxu0 0
    %369 = vmatprep.subr.bf16.mxu0 0
    %370 = vmatpush2.bf16.msra.mxu0 0
    %371 = vmatprep.subr.bf16.mxu0 0
    %372 = vmatpush2.bf16.msra.mxu0 0
    %373 = vmatprep.mubr.bf16.mxu0 0
    %374 = vmatmul.mubr.bf16.gmra.mxu0 %v269
    %v375 = vpop.f32.mrf.mxu0
    %v376 = vadd.f32 %v291, %v375
    %v377 = vpop.f32.mrf.mxu0
    %v378 = vpop.f32.mrf.mxu0
    %v379 = vadd.f32 %v291, %v378
    %v380 = vpop.f32.mrf.mxu0
    %381 = vdwg.mxu0
    %v382 = vld [vmem:[%s7] sm:$0x1]
    %v384 = vlaneseq
    %v385 = vshrl.u32 %v384, 7
    %v386 = vsub.s32 0, %v385
    %v387 = vrot.slane %v382, %v386
    %v389 = vmax.f32 %v376, %v387
    %v390 = vmax.f32 %v379, %v387
    %v391 = vld [vmem:[%s8] sm:$0x1]
    %v393 = vlaneseq
    %v394 = vshrl.u32 %v393, 7
    %v395 = vsub.s32 0, %v394
    %v396 = vrot.slane %v391, %v395
    %v398 = vmin.f32 %v389, %v396
    %v399 = vmin.f32 %v390, %v396
    %v400 = vpack.c.bf16 %v399, %v398
    %v402 = vunpack.c.l.b16 %v400
    %v403 = vunpack.c.h.b16 %v400
    %v404 = vpack.c.b16 %v402, %v402
    %v405 = vpack.c.b16 %v403, %v403
    %408 = vst [vmem:[#allocation10] sm:$0xf] %v404
    %409 = vst [vmem:[#allocation10 + $0x4] sm:$0xf] %v405
    // Predicated region
    $region54: #{tpu_custom_call.1} parent=1 // pred_check
      _
    $region55: #{tpu_custom_call.1} parent=1 // pred_check_branch
      %411 = sbr.rel (0) target = $region57
    $region56: #{tpu_custom_call.1} parent=1 // pred_region
      %s413 = ssub.s32 128, 128
      %414 = vsyncadd [#allocation4], %s413
      %s415 = sshll.u32 [#allocation10], 4
      %s416 = int_to_ptr.vmem [resolvable:$true] %s415
      %421 = dma.vmem_to_hbm [thread:$0]  %s416, 128, %s9, [#allocation4], 64, 64, 4
    $region57: #{tpu_custom_call.1} parent=1 // pred_fallthru
      _
    // Predicated region
    $region58: #{tpu_custom_call.1} parent=1 // pred_check
      _
    $region59: #{tpu_custom_call.1} parent=1 // pred_check_branch
      %423 = sbr.rel (0) target = $region61
    $region60: #{tpu_custom_call.1} parent=1 // pred_region
      %424 = dma.done [#allocation4], 128
    $region61: #{tpu_custom_call.1} parent=1 // pred_fallthru
      _
    %425 = vsyncpa [#allocation3], 1
    %426 = vsyncpa [#allocation6], 1
    %427 = vsyncpa [#allocation9], 1
    %428 = vsyncpa [#allocation4], 1

// kernel: tpu_custom_call.1
$region0: #{tpu_custom_call.1}
  #allocation0 [shape = 'u32[]', space=smem, size = 0x4, offset = 0x4, fixed_abs, tag = 'smem constant byte address 0x4 - core index']
  #allocation1 [shape = 'u32[144,128]{1,0:T(1,128)}', space=vmem, size = 0x12000, scoped, tag = 'internal scratch']
  %s0 = inlined_call_operand.hbm [shape: f32[16,16], index: 0, kind: input, shape index: {}]
  %s1 = inlined_call_operand.hbm [shape: bf16[16,128], index: 1, kind: input, shape index: {}]
  %s2 = inlined_call_operand.vmem [shape: f32[1,128], index: 2, kind: input, shape index: {}]
  %s3 = inlined_call_operand.hbm [shape: bf16[128,128], index: 3, kind: input, shape index: {}]
  %s4 = inlined_call_operand.vmem [shape: f32[1,128], index: 4, kind: input, shape index: {}]
  %s5 = inlined_call_operand.hbm [shape: bf16[128,128], index: 5, kind: input, shape index: {}]
  %s6 = inlined_call_operand.vmem [shape: f32[1,128], index: 6, kind: input, shape index: {}]
  %s7 = inlined_call_operand.vmem [shape: f32[1,128], index: 7, kind: input, shape index: {}]
  %s8 = inlined_call_operand.vmem [shape: f32[1,128], index: 8, kind: input, shape index: {}]
  %s9 = inlined_call_operand.hbm [shape: bf16[16,128], index: 9, kind: output, shape index: {}]
  %s10 = sld [smem:[#allocation0]]
  $region62: #{tpu_custom_call.1} parent=0
    _
  %s12 = ssub.s32 1, %s10
  %s13 = scalar_select 0, %s12, %s10
  $region1: #{tpu_custom_call.1} parent=0
    #allocation2 [shape = 'u8[8192]{0}', space=vmem, size = 0x2000, scoped, tag = 'input window, operand 0, single buffered']
    #allocation3 [shape = 's32[1]{0}', space=sflag, size = 0x4, scoped, tag = 'scoped memory for tpu_custom_call.1']
    #allocation4 [shape = 's32[1]{0}', space=sflag, size = 0x4, scoped, tag = 'scoped memory for tpu_custom_call.1']
    #allocation5 [shape = 'u8[4096]{0}', space=vmem, size = 0x1000, scoped, tag = 'input window, operand 1, single buffered']
    #allocation6 [shape = 's32[1]{0}', space=sflag, size = 0x4, scoped, tag = 'scoped memory for tpu_custom_call.1']
    #allocation7 [shape = 'u8[32768]{0}', space=vmem, size = 0x8000, scoped, tag = 'input window, operand 3, single buffered']
    #allocation8 [shape = 'u8[32768]{0}', space=vmem, size = 0x8000, scoped, tag = 'input window, operand 5, single buffered']
    #allocation9 [shape = 's32[1]{0}', space=sflag, size = 0x4, scoped, tag = 'scoped memory for tpu_custom_call.1']
    #allocation10 [shape = 'u8[4096]{0}', space=vmem, size = 0x1000, scoped, tag = 'output window, operand 0, single buffered']
    %14 = vsyncpa [#allocation3], 0
    %15 = vsyncpa [#allocation6], 0
    %16 = vsyncpa [#allocation9], 0
    %17 = vsyncpa [#allocation4], 0
    // Predicated region
    $region2: #{tpu_custom_call.1} parent=1 // pred_check
      _
    $region3: #{tpu_custom_call.1} parent=1 // pred_check_branch
      %19 = sbr.rel (0) target = $region5
    $region4: #{tpu_custom_call.1} parent=1 // pred_region
      %s21 = ssub.s32 256, 256
      %22 = vsyncadd [#allocation3], %s21
      %s23 = sshll.u32 [#allocation2], 4
      %s24 = int_to_ptr.vmem [resolvable:$true] %s23
      %29 = dma.hbm_to_vmem [thread:$0]  %s0, 256, %s24, [#allocation3], 128, 128, 8
    $region5: #{tpu_custom_call.1} parent=1 // pred_fallthru
      _
    // Predicated region
    $region6: #{tpu_custom_call.1} parent=1 // pred_check
      _
    $region7: #{tpu_custom_call.1} parent=1 // pred_check_branch
      %31 = sbr.rel (0) target = $region9
    $region8: #{tpu_custom_call.1} parent=1 // pred_region
      %s33 = ssub.s32 128, 128
      %34 = vsyncadd [#allocation6], %s33
      %s35 = sshll.u32 [#allocation5], 4
      %s36 = int_to_ptr.vmem [resolvable:$true] %s35
      %41 = dma.hbm_to_vmem [thread:$0]  %s1, 128, %s36, [#allocation6], 64, 64, 4
    $region9: #{tpu_custom_call.1} parent=1 // pred_fallthru
      _
    // Predicated region
    $region10: #{tpu_custom_call.1} parent=1 // pred_check
      _
    $region11: #{tpu_custom_call.1} parent=1 // pred_check_branch
      %43 = sbr.rel (0) target = $region13
    $region12: #{tpu_custom_call.1} parent=1 // pred_region
      _
    $region13: #{tpu_custom_call.1} parent=1 // pred_fallthru
      _
    // Predicated region
    $region14: #{tpu_custom_call.1} parent=1 // pred_check
      _
    $region15: #{tpu_custom_call.1} parent=1 // pred_check_branch
      %45 = sbr.rel (0) target = $region17
    $region16: #{tpu_custom_call.1} parent=1 // pred_region
      %s47 = ssub.s32 1024, 1024
      %48 = vsyncadd [#allocation6], %s47
      %s49 = sshll.u32 [#allocation7], 4
      %s50 = int_to_ptr.vmem [resolvable:$true] %s49
      %55 = dma.hbm_to_vmem [thread:$0]  %s3, 1024, %s50, [#allocation6], 64, 64, 4
    $region17: #{tpu_custom_call.1} parent=1 // pred_fallthru
      _
    // Predicated region
    $region18: #{tpu_custom_call.1} parent=1 // pred_check
      _
    $region19: #{tpu_custom_call.1} parent=1 // pred_check_branch
      %57 = sbr.rel (0) target = $region21
    $region20: #{tpu_custom_call.1} parent=1 // pred_region
      _
    $region21: #{tpu_custom_call.1} parent=1 // pred_fallthru
      _
    // Predicated region
    $region22: #{tpu_custom_call.1} parent=1 // pred_check
      _
    $region23: #{tpu_custom_call.1} parent=1 // pred_check_branch
      %59 = sbr.rel (0) target = $region25
    $region24: #{tpu_custom_call.1} parent=1 // pred_region
      %s61 = ssub.s32 1024, 1024
      %62 = vsyncadd [#allocation9], %s61
      %s63 = sshll.u32 [#allocation8], 4
      %s64 = int_to_ptr.vmem [resolvable:$true] %s63
      %69 = dma.hbm_to_vmem [thread:$0]  %s5, 1024, %s64, [#allocation9], 64, 64, 4
    $region25: #{tpu_custom_call.1} parent=1 // pred_fallthru
      _
    // Predicated region
    $region26: #{tpu_custom_call.1} parent=1 // pred_check
      _
    $region27: #{tpu_custom_call.1} parent=1 // pred_check_branch
      %71 = sbr.rel (0) target = $region29
    $region28: #{tpu_custom_call.1} parent=1 // pred_region
      _
    $region29: #{tpu_custom_call.1} parent=1 // pred_fallthru
      _
    // Predicated region
    $region30: #{tpu_custom_call.1} parent=1 // pred_check
      _
    $region31: #{tpu_custom_call.1} parent=1 // pred_check_branch
      %73 = sbr.rel (0) target = $region33
    $region32: #{tpu_custom_call.1} parent=1 // pred_region
      _
    $region33: #{tpu_custom_call.1} parent=1 // pred_fallthru
      _
    // Predicated region
    $region34: #{tpu_custom_call.1} parent=1 // pred_check
      _
    $region35: #{tpu_custom_call.1} parent=1 // pred_check_branch
      %75 = sbr.rel (0) target = $region37
    $region36: #{tpu_custom_call.1} parent=1 // pred_region
      _
    $region37: #{tpu_custom_call.1} parent=1 // pred_fallthru
      _
    // Predicated region
    $region38: #{tpu_custom_call.1} parent=1 // pred_check
      _
    $region39: #{tpu_custom_call.1} parent=1 // pred_check_branch
      %77 = sbr.rel (0) target = $region41
    $region40: #{tpu_custom_call.1} parent=1 // pred_region
      %78 = dma.done [#allocation3], 256
    $region41: #{tpu_custom_call.1} parent=1 // pred_fallthru
      _
    // Predicated region
    $region42: #{tpu_custom_call.1} parent=1 // pred_check
      _
    $region43: #{tpu_custom_call.1} parent=1 // pred_check_branch
      %80 = sbr.rel (0) target = $region45
    $region44: #{tpu_custom_call.1} parent=1 // pred_region
      %81 = dma.done [#allocation6], 128
    $region45: #{tpu_custom_call.1} parent=1 // pred_fallthru
      _
    // Predicated region
    $region46: #{tpu_custom_call.1} parent=1 // pred_check
      _
    $region47: #{tpu_custom_call.1} parent=1 // pred_check_branch
      %83 = sbr.rel (0) target = $region49
    $region48: #{tpu_custom_call.1} parent=1 // pred_region
      %84 = dma.done [#allocation6], 1024
    $region49: #{tpu_custom_call.1} parent=1 // pred_fallthru
      _
    // Predicated region
    $region50: #{tpu_custom_call.1} parent=1 // pred_check
      _
    $region51: #{tpu_custom_call.1} parent=1 // pred_check_branch
      %86 = sbr.rel (0) target = $region53
    $region52: #{tpu_custom_call.1} parent=1 // pred_region
      %87 = dma.done [#allocation9], 1024
    $region53: #{tpu_custom_call.1} parent=1 // pred_fallthru
      _
    %v89 = vld [vmem:[#allocation2] sm:$0xff]
    %v90 = vld [vmem:[#allocation2 + $0x8] sm:$0xff]
    %v91 = vpack.c.bf16 %v90, %v89
    %v92 = vld [vmem:[#allocation5] sm:$0xf]
    %v93 = vld [vmem:[#allocation5 + $0x4] sm:$0xf]
    %v94 = vld [vmem:[%s2] sm:$0x1]
    %v96 = vlaneseq
    %v97 = vshrl.u32 %v96, 7
    %v98 = vsub.s32 0, %v97
    %v99 = vrot.slane %v94, %v98
    %v103 = vunpack.c.l.b16 %v92
    %v104 = vunpack.c.l.b16 %v93
    %v105 = vpack.c.b16 %v104, %v103
    %vm107 = vcmask 130048
    %v109 = vsel %vm107, %v91, 0
    %111 = vmatprep.subr.bf16.mxu0 0
    %112 = vmatpush1.bf16.msra.mxu0 0
    %113 = vmatprep.subr.bf16.mxu0 0
    %114 = vmatpush1.bf16.msra.mxu0 0
    %115 = vmatprep.subr.bf16.mxu0 0
    %116 = vmatpush1.bf16.msra.mxu0 0
    %117 = vmatprep.subr.bf16.mxu0 0
    %118 = vmatpush1.bf16.msra.mxu0 0
    %119 = vmatprep.subr.bf16.mxu0 0
    %120 = vmatpush1.bf16.msra.mxu0 0
    %121 = vmatprep.subr.bf16.mxu0 0
    %122 = vmatpush1.bf16.msra.mxu0 0
    %123 = vmatprep.subr.bf16.mxu0 0
    %124 = vmatpush1.bf16.msra.mxu0 0
    %125 = vmatprep.subr.bf16.mxu0 0
    %126 = vmatpush1.bf16.msra.mxu0 %v105
    %127 = vmatprep.subr.bf16.mxu0 0
    %128 = vmatpush2.bf16.msra.mxu0 0
    %129 = vmatprep.subr.bf16.mxu0 0
    %130 = vmatpush2.bf16.msra.mxu0 0
    %131 = vmatprep.subr.bf16.mxu0 0
    %132 = vmatpush2.bf16.msra.mxu0 0
    %133 = vmatprep.subr.bf16.mxu0 0
    %134 = vmatpush2.bf16.msra.mxu0 0
    %135 = vmatprep.subr.bf16.mxu0 0
    %136 = vmatpush2.bf16.msra.mxu0 0
    %137 = vmatprep.subr.bf16.mxu0 0
    %138 = vmatpush2.bf16.msra.mxu0 0
    %139 = vmatprep.subr.bf16.mxu0 0
    %140 = vmatpush2.bf16.msra.mxu0 0
    %141 = vmatprep.subr.bf16.mxu0 0
    %142 = vmatpush2.bf16.msra.mxu0 0
    %143 = vmatprep.mubr.bf16.mxu0 0
    %144 = vmatmul.mubr.bf16.gmra.mxu0 %v109
    %v145 = vpop.f32.mrf.mxu0
    %v146 = vadd.f32 %v99, %v145
    %v147 = vpop.f32.mrf.mxu0
    %v148 = vpop.f32.mrf.mxu0
    %v149 = vadd.f32 %v99, %v148
    %v150 = vpop.f32.mrf.mxu0
    %151 = vdwg.mxu0
    %v152 = vmax.f32 %v146, 0.0
    %v153 = vmax.f32 %v149, 0.0
    %v154 = vpack.c.bf16 %v153, %v152
    %v155 = vld [vmem:[#allocation7] sm:$0xf]
    %v156 = vld [vmem:[#allocation7 + $0x4] sm:$0xf]
    %v157 = vld [vmem:[#allocation7 + $0x8] sm:$0xf]
    %v158 = vld [vmem:[#allocation7 + $0xc] sm:$0xf]
    %v159 = vld [vmem:[#allocation7 + $0x10] sm:$0xf]
    %v160 = vld [vmem:[#allocation7 + $0x14] sm:$0xf]
    %v161 = vld [vmem:[#allocation7 + $0x18] sm:$0xf]
    %v162 = vld [vmem:[#allocation7 + $0x1c] sm:$0xf]
    %v163 = vld [vmem:[#allocation7 + $0x20] sm:$0xf]
    %v164 = vld [vmem:[#allocation7 + $0x24] sm:$0xf]
    %v165 = vld [vmem:[#allocation7 + $0x28] sm:$0xf]
    %v166 = vld [vmem:[#allocation7 + $0x2c] sm:$0xf]
    %v167 = vld [vmem:[#allocation7 + $0x30] sm:$0xf]
    %v168 = vld [vmem:[#allocation7 + $0x34] sm:$0xf]
    %v169 = vld [vmem:[#allocation7 + $0x38] sm:$0xf]
    %v170 = vld [vmem:[#allocation7 + $0x3c] sm:$0xf]
    %v171 = vld [vmem:[%s4] sm:$0x1]
    %v173 = vlaneseq
    %v174 = vshrl.u32 %v173, 7
    %v175 = vsub.s32 0, %v174
    %v176 = vrot.slane %v171, %v175
    %v194 = vunpack.c.l.b16 %v155
    %v195 = vunpack.c.l.b16 %v156
    %v196 = vunpack.c.l.b16 %v157
    %v197 = vunpack.c.l.b16 %v158
    %v198 = vunpack.c.l.b16 %v159
    %v199 = vunpack.c.l.b16 %v160
    %v200 = vunpack.c.l.b16 %v161
    %v201 = vunpack.c.l.b16 %v162
    %v202 = vunpack.c.l.b16 %v163
    %v203 = vunpack.c.l.b16 %v164
    %v204 = vunpack.c.l.b16 %v165
    %v205 = vunpack.c.l.b16 %v166
    %v206 = vunpack.c.l.b16 %v167
    %v207 = vunpack.c.l.b16 %v168
    %v208 = vunpack.c.l.b16 %v169
    %v209 = vunpack.c.l.b16 %v170
    %v210 = vpack.c.b16 %v195, %v194
    %v211 = vpack.c.b16 %v197, %v196
    %v212 = vpack.c.b16 %v199, %v198
    %v213 = vpack.c.b16 %v201, %v200
    %v214 = vpack.c.b16 %v203, %v202
    %v215 = vpack.c.b16 %v205, %v204
    %v216 = vpack.c.b16 %v207, %v206
    %v217 = vpack.c.b16 %v209, %v208
    %226 = vmatprep.subr.bf16.mxu0 0
    %227 = vmatpush1.bf16.msra.mxu0 %v217
    %228 = vmatprep.subr.bf16.mxu0 0
    %229 = vmatpush1.bf16.msra.mxu0 %v216
    %230 = vmatprep.subr.bf16.mxu0 0
    %231 = vmatpush1.bf16.msra.mxu0 %v215
    %232 = vmatprep.subr.bf16.mxu0 0
    %233 = vmatpush1.bf16.msra.mxu0 %v214
    %234 = vmatprep.subr.bf16.mxu0 0
    %235 = vmatpush1.bf16.msra.mxu0 %v213
    %236 = vmatprep.subr.bf16.mxu0 0
    %237 = vmatpush1.bf16.msra.mxu0 %v212
    %238 = vmatprep.subr.bf16.mxu0 0
    %239 = vmatpush1.bf16.msra.mxu0 %v211
    %240 = vmatprep.subr.bf16.mxu0 0
    %241 = vmatpush1.bf16.msra.mxu0 %v210
    %242 = vmatprep.subr.bf16.mxu0 0
    %243 = vmatpush2.bf16.msra.mxu0 0
    %244 = vmatprep.subr.bf16.mxu0 0
    %245 = vmatpush2.bf16.msra.mxu0 0
    %246 = vmatprep.subr.bf16.mxu0 0
    %247 = vmatpush2.bf16.msra.mxu0 0
    %248 = vmatprep.subr.bf16.mxu0 0
    %249 = vmatpush2.bf16.msra.mxu0 0
    %250 = vmatprep.subr.bf16.mxu0 0
    %251 = vmatpush2.bf16.msra.mxu0 0
    %252 = vmatprep.subr.bf16.mxu0 0
    %253 = vmatpush2.bf16.msra.mxu0 0
    %254 = vmatprep.subr.bf16.mxu0 0
    %255 = vmatpush2.bf16.msra.mxu0 0
    %256 = vmatprep.subr.bf16.mxu0 0
    %257 = vmatpush2.bf16.msra.mxu0 0
    %258 = vmatprep.mubr.bf16.mxu0 0
    %259 = vmatmul.mubr.bf16.gmra.mxu0 %v154
    %v260 = vpop.f32.mrf.mxu0
    %v261 = vadd.f32 %v176, %v260
    %v262 = vpop.f32.mrf.mxu0
    %v263 = vpop.f32.mrf.mxu0
    %v264 = vadd.f32 %v176, %v263
    %v265 = vpop.f32.mrf.mxu0
    %266 = vdwg.mxu0
    %v267 = vmax.f32 %v261, 0.0
    %v268 = vmax.f32 %v264, 0.0
    %v269 = vpack.c.bf16 %v268, %v267
    %v270 = vld [vmem:[#allocation8] sm:$0xf]
    %v271 = vld [vmem:[#allocation8 + $0x4] sm:$0xf]
    %v272 = vld [vmem:[#allocation8 + $0x8] sm:$0xf]
    %v273 = vld [vmem:[#allocation8 + $0xc] sm:$0xf]
    %v274 = vld [vmem:[#allocation8 + $0x10] sm:$0xf]
    %v275 = vld [vmem:[#allocation8 + $0x14] sm:$0xf]
    %v276 = vld [vmem:[#allocation8 + $0x18] sm:$0xf]
    %v277 = vld [vmem:[#allocation8 + $0x1c] sm:$0xf]
    %v278 = vld [vmem:[#allocation8 + $0x20] sm:$0xf]
    %v279 = vld [vmem:[#allocation8 + $0x24] sm:$0xf]
    %v280 = vld [vmem:[#allocation8 + $0x28] sm:$0xf]
    %v281 = vld [vmem:[#allocation8 + $0x2c] sm:$0xf]
    %v282 = vld [vmem:[#allocation8 + $0x30] sm:$0xf]
    %v283 = vld [vmem:[#allocation8 + $0x34] sm:$0xf]
    %v284 = vld [vmem:[#allocation8 + $0x38] sm:$0xf]
    %v285 = vld [vmem:[#allocation8 + $0x3c] sm:$0xf]
    %v286 = vld [vmem:[%s6] sm:$0x1]
    %v288 = vlaneseq
    %v289 = vshrl.u32 %v288, 7
    %v290 = vsub.s32 0, %v289
    %v291 = vrot.slane %v286, %v290
    %v309 = vunpack.c.l.b16 %v270
    %v310 = vunpack.c.l.b16 %v271
    %v311 = vunpack.c.l.b16 %v272
    %v312 = vunpack.c.l.b16 %v273
    %v313 = vunpack.c.l.b16 %v274
    %v314 = vunpack.c.l.b16 %v275
    %v315 = vunpack.c.l.b16 %v276
    %v316 = vunpack.c.l.b16 %v277
    %v317 = vunpack.c.l.b16 %v278
    %v318 = vunpack.c.l.b16 %v279
    %v319 = vunpack.c.l.b16 %v280
    %v320 = vunpack.c.l.b16 %v281
    %v321 = vunpack.c.l.b16 %v282
    %v322 = vunpack.c.l.b16 %v283
    %v323 = vunpack.c.l.b16 %v284
    %v324 = vunpack.c.l.b16 %v285
    %v325 = vpack.c.b16 %v310, %v309
    %v326 = vpack.c.b16 %v312, %v311
    %v327 = vpack.c.b16 %v314, %v313
    %v328 = vpack.c.b16 %v316, %v315
    %v329 = vpack.c.b16 %v318, %v317
    %v330 = vpack.c.b16 %v320, %v319
    %v331 = vpack.c.b16 %v322, %v321
    %v332 = vpack.c.b16 %v324, %v323
    %341 = vmatprep.subr.bf16.mxu0 0
    %342 = vmatpush1.bf16.msra.mxu0 %v332
    %343 = vmatprep.subr.bf16.mxu0 0
    %344 = vmatpush1.bf16.msra.mxu0 %v331
    %345 = vmatprep.subr.bf16.mxu0 0
    %346 = vmatpush1.bf16.msra.mxu0 %v330
    %347 = vmatprep.subr.bf16.mxu0 0
    %348 = vmatpush1.bf16.msra.mxu0 %v329
    %349 = vmatprep.subr.bf16.mxu0 0
    %350 = vmatpush1.bf16.msra.mxu0 %v328
    %351 = vmatprep.subr.bf16.mxu0 0
    %352 = vmatpush1.bf16.msra.mxu0 %v327
    %353 = vmatprep.subr.bf16.mxu0 0
    %354 = vmatpush1.bf16.msra.mxu0 %v326
    %355 = vmatprep.subr.bf16.mxu0 0
    %356 = vmatpush1.bf16.msra.mxu0 %v325
    %357 = vmatprep.subr.bf16.mxu0 0
    %358 = vmatpush2.bf16.msra.mxu0 0
    %359 = vmatprep.subr.bf16.mxu0 0
    %360 = vmatpush2.bf16.msra.mxu0 0
    %361 = vmatprep.subr.bf16.mxu0 0
    %362 = vmatpush2.bf16.msra.mxu0 0
    %363 = vmatprep.subr.bf16.mxu0 0
    %364 = vmatpush2.bf16.msra.mxu0 0
    %365 = vmatprep.subr.bf16.mxu0 0
    %366 = vmatpush2.bf16.msra.mxu0 0
    %367 = vmatprep.subr.bf16.mxu0 0
    %368 = vmatpush2.bf16.msra.mxu0 0
    %369 = vmatprep.subr.bf16.mxu0 0
    %370 = vmatpush2.bf16.msra.mxu0 0
    %371 = vmatprep.subr.bf16.mxu0 0
    %372 = vmatpush2.bf16.msra.mxu0 0
    %373 = vmatprep.mubr.bf16.mxu0 0
    %374 = vmatmul.mubr.bf16.gmra.mxu0 %v269
    %v375 = vpop.f32.mrf.mxu0
    %v376 = vadd.f32 %v291, %v375
    %v377 = vpop.f32.mrf.mxu0
    %v378 = vpop.f32.mrf.mxu0
    %v379 = vadd.f32 %v291, %v378
    %v380 = vpop.f32.mrf.mxu0
    %381 = vdwg.mxu0
    %v382 = vld [vmem:[%s7] sm:$0x1]
    %v384 = vlaneseq
    %v385 = vshrl.u32 %v384, 7
    %v386 = vsub.s32 0, %v385
    %v387 = vrot.slane %v382, %v386
    %v389 = vmax.f32 %v376, %v387
    %v390 = vmax.f32 %v379, %v387
    %v391 = vld [vmem:[%s8] sm:$0x1]
    %v393 = vlaneseq
    %v394 = vshrl.u32 %v393, 7
    %v395 = vsub.s32 0, %v394
    %v396 = vrot.slane %v391, %v395
    %v398 = vmin.f32 %v389, %v396
    %v399 = vmin.f32 %v390, %v396
    %v400 = vpack.c.bf16 %v399, %v398
    %v402 = vunpack.c.l.b16 %v400
    %v403 = vunpack.c.h.b16 %v400
    %v404 = vpack.c.b16 %v402, %v402
    %v405 = vpack.c.b16 %v403, %v403
    %408 = vst [vmem:[#allocation10] sm:$0xf] %v404
    %409 = vst [vmem:[#allocation10 + $0x4] sm:$0xf] %v405
    // Predicated region
    $region54: #{tpu_custom_call.1} parent=1 // pred_check
      _
    $region55: #{tpu_custom_call.1} parent=1 // pred_check_branch
      %411 = sbr.rel (0) target = $region57
    $region56: #{tpu_custom_call.1} parent=1 // pred_region
      %s413 = ssub.s32 128, 128
      %414 = vsyncadd [#allocation4], %s413
      %s415 = sshll.u32 [#allocation10], 4
      %s416 = int_to_ptr.vmem [resolvable:$true] %s415
      %421 = dma.vmem_to_hbm [thread:$0]  %s416, 128, %s9, [#allocation4], 64, 64, 4
    $region57: #{tpu_custom_call.1} parent=1 // pred_fallthru
      _
    // Predicated region
    $region58: #{tpu_custom_call.1} parent=1 // pred_check
      _
    $region59: #{tpu_custom_call.1} parent=1 // pred_check_branch
      %423 = sbr.rel (0) target = $region61
    $region60: #{tpu_custom_call.1} parent=1 // pred_region
      %424 = dma.done [#allocation4], 128
    $region61: #{tpu_custom_call.1} parent=1 // pred_fallthru
      _
    %425 = vsyncpa [#allocation3], 1
    %426 = vsyncpa [#allocation6], 1
    %427 = vsyncpa [#allocation9], 1
    %428 = vsyncpa [#allocation4], 1

</llo_original>
